<compile_context>
chip_gen: v6e
topology: v6e:2x2x1
jax: 0.10.0
libtpu: 0.0.40
codegen_flags: <defaults>
</compile_context>

<pallas_src>
import functools

import jax
import jax.numpy as jnp
from jax.experimental import pallas as pl
from jax.experimental.pallas import tpu as pltpu


# ---------------------------------------------------------------------------
# Kernel
# ---------------------------------------------------------------------------
def _two_tower_kernel(u_ref, c_ref, wu_ref, wc_ref, b_ref, o_ref):
    """y[:, :D]  = u @ W_u + b_u
       y[:, D:]  = c @ W_c + b_c
       written as one lane-dense (tile_m, 2*D) store."""
    u_emb = jnp.dot(u_ref[...], wu_ref[...], preferred_element_type=jnp.float32)
    c_emb = jnp.dot(c_ref[...], wc_ref[...], preferred_element_type=jnp.float32)
    # Concatenate in registers -> one unmasked full-width store (no 64-lane vst.msk).
    y = jnp.concatenate([u_emb, c_emb], axis=-1) + b_ref[...]
    o_ref[...] = y.astype(o_ref.dtype)


# ---------------------------------------------------------------------------
# Helpers
# ---------------------------------------------------------------------------
def _default_tile_m():
    """Generation-aware batch tile: v7x has half the VMEM (64 MiB) but ~2.3x the HBM
    bandwidth, so smaller tiles already reach the roofline; v5e/v6e prefer bigger."""
    try:
        kind = jax.devices()[0].device_kind.lower()
    except Exception:
        kind = ""
    if "v7" in kind or "7x" in kind:
        return 512
    return 1024


def _feature_spec(shape, index_map):
    """Feature BlockSpec with 3-deep buffering when supported (per-tile compute is tiny,
    so the input DMA is otherwise exposed)."""
    if hasattr(pl, "Buffered"):
        try:
            return pl.BlockSpec(shape, index_map, pipeline_mode=pl.Buffered(3))
        except TypeError:
            pass
    return pl.BlockSpec(shape, index_map)


def init_linear_params(key, in_dim, out_dim, dtype=jnp.float32):
    """Matches nn.Linear init: U(-1/sqrt(fan_in), 1/sqrt(fan_in)) for W and b."""
    kw, kb = jax.random.split(key)
    bound = 1.0 / jnp.sqrt(jnp.asarray(in_dim, dtype))
    w = jax.random.uniform(kw, (in_dim, out_dim), dtype, -bound, bound)
    b = jax.random.uniform(kb, (1, out_dim), dtype, -bound, bound)
    return w, b


# ---------------------------------------------------------------------------
# pallas_call wrapper
# ---------------------------------------------------------------------------
def two_tower_matmul(user_f, content_f, w_user, w_content, b_fused, *,
                     tile_m=None, compute_dtype=jnp.bfloat16,
                     vmem_budget_bytes=24 << 20):
    """Fused two-tower forward: returns (B, 2*D) slab [user_emb | content_emb]."""
    B, Du = user_f.shape
    Dc = content_f.shape[1]
    D = w_user.shape[1]
    Dout2 = 2 * D
    out_dtype = jnp.float32

    # Cast to the matmul dtype (bf16 default: higher MXU rate, half the DMA bytes).
    u = user_f.astype(compute_dtype)
    c = content_f.astype(compute_dtype)
    wu = w_user.astype(compute_dtype)
    wc = w_content.astype(compute_dtype)
    b = b_fused.astype(jnp.float32).reshape(1, Dout2)

    if tile_m is None:
        tile_m = _default_tile_m()

    # Auto-shrink the batch tile so triple-buffered feature tiles + double-buffered
    # output tile + resident weights stay inside a conservative scoped-VMEM budget
    # (protects v7x's 64 MiB / 32 MiB-scoped VMEM for wide feature dims).
    in_bytes = jnp.dtype(compute_dtype).itemsize
    row_bytes = (Du + Dc) * in_bytes + Dout2 * 4
    weight_bytes = (Du + Dc) * D * in_bytes + Dout2 * 4
    while tile_m > 128 and 3 * tile_m * row_bytes + 2 * weight_bytes > vmem_budget_bytes:
        tile_m //= 2

    if B >= tile_m:
        # Tiled, pipelined, megacore-sharded path.  Pad the batch so every grid step
        # sees a full tile (no divisibility fallback).
        grid_m = pl.cdiv(B, tile_m)
        b_pad = grid_m * tile_m
        if b_pad != B:
            u = jnp.pad(u, ((0, b_pad - B), (0, 0)))
            c = jnp.pad(c, ((0, b_pad - B), (0, 0)))
        y = pl.pallas_call(
            _two_tower_kernel,
            out_shape=jax.ShapeDtypeStruct((b_pad, Dout2), out_dtype),
            grid=(grid_m,),
            in_specs=[
                _feature_spec((tile_m, Du), lambda i: (i, 0)),
                _feature_spec((tile_m, Dc), lambda i: (i, 0)),
                pl.BlockSpec((Du, D), lambda i: (0, 0)),      # weights stay resident
                pl.BlockSpec((Dc, D), lambda i: (0, 0)),
                pl.BlockSpec((1, Dout2), lambda i: (0, 0)),
            ],
            out_specs=pl.BlockSpec((tile_m, Dout2), lambda i: (i, 0)),
            compiler_params=pltpu.CompilerParams(
                # "parallel" -> 2-TC sharding on v7x (no-op on 1-TC v5e/v6e).
                dimension_semantics=("parallel",),
                # Above v5e's 16 MiB scoped default; safe on v6e/v7x too.
                vmem_limit_bytes=32 << 20,
            ),
        )(u, c, wu, wc, b)
        return y[:B] if b_pad != B else y

    # Small-batch path: launch/DMA-overhead bound -> flat no-grid call, whole arrays
    # resident in VMEM, no pipelining machinery.
    vmem = pl.BlockSpec(memory_space=pltpu.MemorySpace.VMEM)
    return pl.pallas_call(
        _two_tower_kernel,
        out_shape=jax.ShapeDtypeStruct((B, Dout2), out_dtype),
        in_specs=[vmem, vmem, vmem, vmem, vmem],
        out_specs=vmem,
    )(u, c, wu, wc, b)


@functools.partial(jax.jit, static_argnames=("compute_dtype", "tile_m", "return_slab"))
def two_tower_forward(user_features, content_features, w_user, w_content, b_fused,
                      compute_dtype=jnp.bfloat16, tile_m=None, return_slab=False):
    """Forward pass of TwoTowerModel: returns (user_embedding, content_embedding).

    Set return_slab=True to receive the fused (B, 2*D) slab and skip the two
    wrapper lane-slices (avoids extra HBM copies when the consumer can use it)."""
    D = w_user.shape[1]
    y = two_tower_matmul(user_features, content_features, w_user, w_content, b_fused,
                         tile_m=tile_m, compute_dtype=compute_dtype)
    if return_slab:
        return y
    return y[:, :D], y[:, D:]


# ---------------------------------------------------------------------------
# Self-test
# ---------------------------------------------------------------------------
if __name__ == "__main__":
    # Small shapes consistent with the module's forward:
    # user_dim = 3 * TOP_CONTENT (use TOP_CONTENT=8 -> 24), content_dim = 16, output_dim = 64
    B = 4
    TOP_CONTENT = 8
    user_dim = 3 * TOP_CONTENT        # 24
    content_dim = 16
    output_dim = 64

    key = jax.random.PRNGKey(0)
    k_uf, k_cf, k_up, k_cp = jax.random.split(key, 4)

    user_features = jax.random.normal(k_uf, (B, user_dim), jnp.float32)
    content_features = jax.random.normal(k_cf, (B, content_dim), jnp.float32)

    uw, ub = init_linear_params(k_up, user_dim, output_dim)
    cw, cb = init_linear_params(k_cp, content_dim, output_dim)
    b_fused = jnp.concatenate([ub, cb], axis=-1)   # (1, 2*output_dim), built once

    # Plain-JAX reference of the original two-tower forward (f32).
    ref_u = user_features @ uw + ub
    ref_c = content_features @ cw + cb

    # 1) f32 compute path (tight, bit-level check of the kernel structure).
    u_emb, c_emb = two_tower_forward(user_features, content_features, uw, cw, b_fused,
                                     compute_dtype=jnp.float32)
    jax.block_until_ready((u_emb, c_emb))
    assert u_emb.shape == (B, output_dim) and c_emb.shape == (B, output_dim)
    assert jnp.allclose(u_emb, ref_u, atol=1e-5)
    assert jnp.allclose(c_emb, ref_c, atol=1e-5)

    # 2) bf16 compute path (production default; f32 accumulation bounds the error).
    u16, c16 = two_tower_forward(user_features, content_features, uw, cw, b_fused,
                                 compute_dtype=jnp.bfloat16)
    jax.block_until_ready((u16, c16))
    assert jnp.allclose(u16, ref_u, atol=5e-2, rtol=5e-2)
    assert jnp.allclose(c16, ref_c, atol=5e-2, rtol=5e-2)

    # 3) Exercise the tiled (grid + padding) path: B=200 with tile_m=128 -> grid=2,
    #    padded to 256, sliced back.
    B2 = 200
    uf2 = jax.random.normal(k_uf, (B2, user_dim), jnp.float32)
    cf2 = jax.random.normal(k_cf, (B2, content_dim), jnp.float32)
    u2, c2 = two_tower_forward(uf2, cf2, uw, cw, b_fused,
                               compute_dtype=jnp.bfloat16, tile_m=128)
    jax.block_until_ready((u2, c2))
    assert u2.shape == (B2, output_dim) and c2.shape == (B2, output_dim)
    assert jnp.allclose(u2, uf2 @ uw + ub, atol=5e-2, rtol=5e-2)
    assert jnp.allclose(c2, cf2 @ cw + cb, atol=5e-2, rtol=5e-2)

    print("KERNEL_OK")
</pallas_src>

<mosaic_0001>
module attributes {stable_mosaic.version = 11 : i64} {
  func.func @_two_tower_kernel(%arg0: memref<4x24xf32, #tpu.memory_space<vmem>>, %arg1: memref<4x16xf32, #tpu.memory_space<vmem>>, %arg2: memref<24x64xf32, #tpu.memory_space<vmem>>, %arg3: memref<16x64xf32, #tpu.memory_space<vmem>>, %arg4: memref<1x128xf32, #tpu.memory_space<vmem>>, %arg5: memref<4x128xf32, #tpu.memory_space<vmem>>) attributes {dimension_semantics = [], scalar_prefetch = 0 : i64, scratch_operands = 0 : i64, tpu.core_type = #tpu.core_type<tc>} {
    %c0 = arith.constant 0 : index
    %c0_0 = arith.constant 0 : index
    %0 = vector.load %arg0[%c0, %c0_0] : memref<4x24xf32, #tpu.memory_space<vmem>>, vector<4x24xf32>
    %c0_1 = arith.constant 0 : index
    %c0_2 = arith.constant 0 : index
    %1 = vector.load %arg2[%c0_1, %c0_2] : memref<24x64xf32, #tpu.memory_space<vmem>>, vector<24x64xf32>
    %cst = arith.constant dense<0.000000e+00> : vector<4x64xf32>
    %2 = tpu.matmul %0, %1, %cst {dimension_numbers = #tpu.dot_dimension_numbers<[1], [0], [0], [1], [0, 0, 1, 1], [], []>} : vector<4x24xf32>, vector<24x64xf32>, vector<4x64xf32> -> vector<4x64xf32>
    %c0_3 = arith.constant 0 : index
    %c0_4 = arith.constant 0 : index
    %3 = vector.load %arg1[%c0_3, %c0_4] : memref<4x16xf32, #tpu.memory_space<vmem>>, vector<4x16xf32>
    %c0_5 = arith.constant 0 : index
    %c0_6 = arith.constant 0 : index
    %4 = vector.load %arg3[%c0_5, %c0_6] : memref<16x64xf32, #tpu.memory_space<vmem>>, vector<16x64xf32>
    %cst_7 = arith.constant dense<0.000000e+00> : vector<4x64xf32>
    %5 = tpu.matmul %3, %4, %cst_7 {dimension_numbers = #tpu.dot_dimension_numbers<[1], [0], [0], [1], [0, 0, 1, 1], [], []>} : vector<4x16xf32>, vector<16x64xf32>, vector<4x64xf32> -> vector<4x64xf32>
    %6 = tpu.concatenate %2, %5 in 1 : vector<4x64xf32>, vector<4x64xf32> -> vector<4x128xf32>
    %c0_8 = arith.constant 0 : index
    %c0_9 = arith.constant 0 : index
    %7 = vector.load %arg4[%c0_8, %c0_9] : memref<1x128xf32, #tpu.memory_space<vmem>>, vector<1x128xf32>
    %8 = vector.broadcast %7 : vector<1x128xf32> to vector<4x128xf32>
    %9 = arith.addf %6, %8 : vector<4x128xf32>
    %c0_10 = arith.constant 0 : index
    %c0_11 = arith.constant 0 : index
    %10 = vector.load %arg5[%c0_10, %c0_11] : memref<4x128xf32, #tpu.memory_space<vmem>>, vector<4x128xf32>
    tpu.vector_store %arg5[%c0_10, %c0_11], %9 {strides = array<i32>} : memref<4x128xf32, #tpu.memory_space<vmem>>, vector<4x128xf32>,
    return
  }
}

</mosaic_0001>

<llo_original>
// kernel: two_tower_forward.1
$region0: #{two_tower_forward.1}
  #allocation0 [shape = 'u32[]', space=smem, size = 0x4, offset = 0x4, fixed_abs, tag = 'smem constant byte address 0x4 - core index']
  #allocation1 [shape = 'u32[144,128]{1,0:T(1,128)}', space=vmem, size = 0x12000, scoped, tag = 'internal scratch']
  %s0 = inlined_call_operand.hbm [shape: f32[4,24], index: 0, kind: input, shape index: {}]
  %s1 = inlined_call_operand.hbm [shape: f32[4,16], index: 1, kind: input, shape index: {}]
  %s2 = inlined_call_operand.hbm [shape: f32[24,64], index: 2, kind: input, shape index: {}]
  %s3 = inlined_call_operand.hbm [shape: f32[16,64], index: 3, kind: input, shape index: {}]
  %s4 = inlined_call_operand.vmem [shape: f32[1,128], index: 4, kind: input, shape index: {}]
  %s5 = inlined_call_operand.vmem [shape: f32[4,128], index: 5, kind: output, shape index: {}]
  %s6 = sld [smem:[#allocation0]]
  $region46: #{two_tower_forward.1} parent=0
    _
  %s8 = ssub.s32 1, %s6
  %s9 = scalar_select 0, %s8, %s6
  $region1: #{two_tower_forward.1} parent=0
    #allocation2 [shape = 'u8[2048]{0}', space=vmem, size = 0x800, scoped, tag = 'input window, operand 0, single buffered']
    #allocation3 [shape = 's32[1]{0}', space=sflag, size = 0x4, scoped, tag = 'scoped memory for two_tower_forward.1']
    #allocation4 [shape = 'u8[2048]{0}', space=vmem, size = 0x800, scoped, tag = 'input window, operand 1, single buffered']
    #allocation5 [shape = 's32[1]{0}', space=sflag, size = 0x4, scoped, tag = 'scoped memory for two_tower_forward.1']
    #allocation6 [shape = 'u8[12288]{0}', space=vmem, size = 0x3000, scoped, tag = 'input window, operand 2, single buffered']
    #allocation7 [shape = 'u8[8192]{0}', space=vmem, size = 0x2000, scoped, tag = 'input window, operand 3, single buffered']
    #allocation8 [shape = 's32[1]{0}', space=sflag, size = 0x4, scoped, tag = 'scoped memory for two_tower_forward.1']
    %10 = vsyncpa [#allocation3], 0
    %11 = vsyncpa [#allocation5], 0
    %12 = vsyncpa [#allocation8], 0
    // Predicated region
    $region2: #{two_tower_forward.1} parent=1 // pred_check
      _
    $region3: #{two_tower_forward.1} parent=1 // pred_check_branch
      %14 = sbr.rel (0) target = $region5
    $region4: #{two_tower_forward.1} parent=1 // pred_region
      %s16 = ssub.s32 64, 64
      %17 = vsyncadd [#allocation3], %s16
      %s19 = sshll.u32 [#allocation2], 4
      %s20 = int_to_ptr.vmem [resolvable:$true] %s19
      %22 = dma.hbm_to_vmem [thread:$0]  %s0, 64, %s20, [#allocation3]
    $region5: #{two_tower_forward.1} parent=1 // pred_fallthru
      _
    // Predicated region
    $region6: #{two_tower_forward.1} parent=1 // pred_check
      _
    $region7: #{two_tower_forward.1} parent=1 // pred_check_branch
      %24 = sbr.rel (0) target = $region9
    $region8: #{two_tower_forward.1} parent=1 // pred_region
      %s26 = ssub.s32 64, 64
      %27 = vsyncadd [#allocation5], %s26
      %s29 = sshll.u32 [#allocation4], 4
      %s30 = int_to_ptr.vmem [resolvable:$true] %s29
      %32 = dma.hbm_to_vmem [thread:$0]  %s1, 64, %s30, [#allocation5]
    $region9: #{two_tower_forward.1} parent=1 // pred_fallthru
      _
    // Predicated region
    $region10: #{two_tower_forward.1} parent=1 // pred_check
      _
    $region11: #{two_tower_forward.1} parent=1 // pred_check_branch
      %34 = sbr.rel (0) target = $region13
    $region12: #{two_tower_forward.1} parent=1 // pred_region
      %s36 = ssub.s32 384, 384
      %37 = vsyncadd [#allocation5], %s36
      %s38 = sshll.u32 [#allocation6], 4
      %s39 = int_to_ptr.vmem [resolvable:$true] %s38
      %44 = dma.hbm_to_vmem [thread:$0]  %s2, 384, %s39, [#allocation5], 128, 128, 8
    $region13: #{two_tower_forward.1} parent=1 // pred_fallthru
      _
    // Predicated region
    $region14: #{two_tower_forward.1} parent=1 // pred_check
      _
    $region15: #{two_tower_forward.1} parent=1 // pred_check_branch
      %46 = sbr.rel (0) target = $region17
    $region16: #{two_tower_forward.1} parent=1 // pred_region
      %s48 = ssub.s32 256, 256
      %49 = vsyncadd [#allocation8], %s48
      %s50 = sshll.u32 [#allocation7], 4
      %s51 = int_to_ptr.vmem [resolvable:$true] %s50
      %56 = dma.hbm_to_vmem [thread:$0]  %s3, 256, %s51, [#allocation8], 128, 128, 8
    $region17: #{two_tower_forward.1} parent=1 // pred_fallthru
      _
    // Predicated region
    $region18: #{two_tower_forward.1} parent=1 // pred_check
      _
    $region19: #{two_tower_forward.1} parent=1 // pred_check_branch
      %58 = sbr.rel (0) target = $region21
    $region20: #{two_tower_forward.1} parent=1 // pred_region
      _
    $region21: #{two_tower_forward.1} parent=1 // pred_fallthru
      _
    // Predicated region
    $region22: #{two_tower_forward.1} parent=1 // pred_check
      _
    $region23: #{two_tower_forward.1} parent=1 // pred_check_branch
      %60 = sbr.rel (0) target = $region25
    $region24: #{two_tower_forward.1} parent=1 // pred_region
      %61 = dma.done [#allocation3], 64
    $region25: #{two_tower_forward.1} parent=1 // pred_fallthru
      _
    // Predicated region
    $region26: #{two_tower_forward.1} parent=1 // pred_check
      _
    $region27: #{two_tower_forward.1} parent=1 // pred_check_branch
      %63 = sbr.rel (0) target = $region29
    $region28: #{two_tower_forward.1} parent=1 // pred_region
      %64 = dma.done [#allocation5], 64
    $region29: #{two_tower_forward.1} parent=1 // pred_fallthru
      _
    // Predicated region
    $region30: #{two_tower_forward.1} parent=1 // pred_check
      _
    $region31: #{two_tower_forward.1} parent=1 // pred_check_branch
      %66 = sbr.rel (0) target = $region33
    $region32: #{two_tower_forward.1} parent=1 // pred_region
      %67 = dma.done [#allocation5], 384
    $region33: #{two_tower_forward.1} parent=1 // pred_fallthru
      _
    // Predicated region
    $region34: #{two_tower_forward.1} parent=1 // pred_check
      _
    $region35: #{two_tower_forward.1} parent=1 // pred_check_branch
      %69 = sbr.rel (0) target = $region37
    $region36: #{two_tower_forward.1} parent=1 // pred_region
      %70 = dma.done [#allocation8], 256
    $region37: #{two_tower_forward.1} parent=1 // pred_fallthru
      _
    %v71 = vld [vmem:[#allocation2] sm:$0xf]
    %v72 = vld [vmem:[#allocation6] sm:$0xff]
    %v73 = vld [vmem:[#allocation6 + $0x8] sm:$0xff]
    %v74 = vld [vmem:[#allocation6 + $0x10] sm:$0xff]
    %vm75 = vcmask 195584
    %v77 = vsel %vm75, %v71, 0
    %79 = vmatprep.subr.mxu0 0.0
    %80 = vmatpush1.msra.mxu0 0.0
    %81 = vmatprep.subr.mxu0 0.0
    %82 = vmatpush1.msra.mxu0 0.0
    %83 = vmatprep.subr.mxu0 0.0
    %84 = vmatpush1.msra.mxu0 0.0
    %85 = vmatprep.subr.mxu0 0.0
    %86 = vmatpush1.msra.mxu0 0.0
    %87 = vmatprep.subr.mxu0 0.0
    %88 = vmatpush1.msra.mxu0 0.0
    %89 = vmatprep.subr.mxu0 0.0
    %90 = vmatpush1.msra.mxu0 0.0
    %91 = vmatprep.subr.mxu0 0.0
    %92 = vmatpush1.msra.mxu0 0.0
    %93 = vmatprep.subr.mxu0 0.0
    %94 = vmatpush1.msra.mxu0 0.0
    %95 = vmatprep.subr.mxu0 0.0
    %96 = vmatpush1.msra.mxu0 0.0
    %97 = vmatprep.subr.mxu0 0.0
    %98 = vmatpush1.msra.mxu0 0.0
    %99 = vmatprep.subr.mxu0 0.0
    %100 = vmatpush1.msra.mxu0 0.0
    %101 = vmatprep.subr.mxu0 0.0
    %102 = vmatpush1.msra.mxu0 0.0
    %103 = vmatprep.subr.mxu0 0.0
    %104 = vmatpush1.msra.mxu0 0.0
    %105 = vmatprep.subr.mxu0 0.0
    %106 = vmatpush1.msra.mxu0 %v74
    %107 = vmatprep.subr.mxu0 0.0
    %108 = vmatpush1.msra.mxu0 %v73
    %109 = vmatprep.subr.mxu0 0.0
    %110 = vmatpush1.msra.mxu0 %v72
    %111 = vmatprep.subr.mxu0 0.0
    %112 = vmatpush2.msra.mxu0 0.0
    %113 = vmatprep.subr.mxu0 0.0
    %114 = vmatpush2.msra.mxu0 0.0
    %115 = vmatprep.subr.mxu0 0.0
    %116 = vmatpush2.msra.mxu0 0.0
    %117 = vmatprep.subr.mxu0 0.0
    %118 = vmatpush2.msra.mxu0 0.0
    %119 = vmatprep.subr.mxu0 0.0
    %120 = vmatpush2.msra.mxu0 0.0
    %121 = vmatprep.subr.mxu0 0.0
    %122 = vmatpush2.msra.mxu0 0.0
    %123 = vmatprep.subr.mxu0 0.0
    %124 = vmatpush2.msra.mxu0 0.0
    %125 = vmatprep.subr.mxu0 0.0
    %126 = vmatpush2.msra.mxu0 0.0
    %127 = vmatprep.subr.mxu0 0.0
    %128 = vmatpush2.msra.mxu0 0.0
    %129 = vmatprep.subr.mxu0 0.0
    %130 = vmatpush2.msra.mxu0 0.0
    %131 = vmatprep.subr.mxu0 0.0
    %132 = vmatpush2.msra.mxu0 0.0
    %133 = vmatprep.subr.mxu0 0.0
    %134 = vmatpush2.msra.mxu0 0.0
    %135 = vmatprep.subr.mxu0 0.0
    %136 = vmatpush2.msra.mxu0 0.0
    %137 = vmatprep.subr.mxu0 0.0
    %138 = vmatpush2.msra.mxu0 0.0
    %139 = vmatprep.subr.mxu0 0.0
    %140 = vmatpush2.msra.mxu0 0.0
    %141 = vmatprep.subr.mxu0 0.0
    %142 = vmatpush2.msra.mxu0 0.0
    %143 = vmatprep.mubr.f32.mxu0 0.0
    %144 = vmatmul.mubr.f32.gmra.mxu0 %v77
    %v145 = vpop.f32.mrf.mxu0
    %v146 = vadd.f32 0.0, %v145
    %v147 = vpop.f32.mrf.mxu0
    %148 = vdwg.mxu0
    %v149 = vld [vmem:[#allocation4] sm:$0xf]
    %v150 = vld [vmem:[#allocation7] sm:$0xff]
    %v151 = vld [vmem:[#allocation7 + $0x8] sm:$0xff]
    %vm152 = vcmask 130048
    %v154 = vsel %vm152, %v149, 0
    %156 = vmatprep.subr.mxu0 0.0
    %157 = vmatpush1.msra.mxu0 0.0
    %158 = vmatprep.subr.mxu0 0.0
    %159 = vmatpush1.msra.mxu0 0.0
    %160 = vmatprep.subr.mxu0 0.0
    %161 = vmatpush1.msra.mxu0 0.0
    %162 = vmatprep.subr.mxu0 0.0
    %163 = vmatpush1.msra.mxu0 0.0
    %164 = vmatprep.subr.mxu0 0.0
    %165 = vmatpush1.msra.mxu0 0.0
    %166 = vmatprep.subr.mxu0 0.0
    %167 = vmatpush1.msra.mxu0 0.0
    %168 = vmatprep.subr.mxu0 0.0
    %169 = vmatpush1.msra.mxu0 0.0
    %170 = vmatprep.subr.mxu0 0.0
    %171 = vmatpush1.msra.mxu0 0.0
    %172 = vmatprep.subr.mxu0 0.0
    %173 = vmatpush1.msra.mxu0 0.0
    %174 = vmatprep.subr.mxu0 0.0
    %175 = vmatpush1.msra.mxu0 0.0
    %176 = vmatprep.subr.mxu0 0.0
    %177 = vmatpush1.msra.mxu0 0.0
    %178 = vmatprep.subr.mxu0 0.0
    %179 = vmatpush1.msra.mxu0 0.0
    %180 = vmatprep.subr.mxu0 0.0
    %181 = vmatpush1.msra.mxu0 0.0
    %182 = vmatprep.subr.mxu0 0.0
    %183 = vmatpush1.msra.mxu0 0.0
    %184 = vmatprep.subr.mxu0 0.0
    %185 = vmatpush1.msra.mxu0 %v151
    %186 = vmatprep.subr.mxu0 0.0
    %187 = vmatpush1.msra.mxu0 %v150
    %188 = vmatprep.subr.mxu0 0.0
    %189 = vmatpush2.msra.mxu0 0.0
    %190 = vmatprep.subr.mxu0 0.0
    %191 = vmatpush2.msra.mxu0 0.0
    %192 = vmatprep.subr.mxu0 0.0
    %193 = vmatpush2.msra.mxu0 0.0
    %194 = vmatprep.subr.mxu0 0.0
    %195 = vmatpush2.msra.mxu0 0.0
    %196 = vmatprep.subr.mxu0 0.0
    %197 = vmatpush2.msra.mxu0 0.0
    %198 = vmatprep.subr.mxu0 0.0
    %199 = vmatpush2.msra.mxu0 0.0
    %200 = vmatprep.subr.mxu0 0.0
    %201 = vmatpush2.msra.mxu0 0.0
    %202 = vmatprep.subr.mxu0 0.0
    %203 = vmatpush2.msra.mxu0 0.0
    %204 = vmatprep.subr.mxu0 0.0
    %205 = vmatpush2.msra.mxu0 0.0
    %206 = vmatprep.subr.mxu0 0.0
    %207 = vmatpush2.msra.mxu0 0.0
    %208 = vmatprep.subr.mxu0 0.0
    %209 = vmatpush2.msra.mxu0 0.0
    %210 = vmatprep.subr.mxu0 0.0
    %211 = vmatpush2.msra.mxu0 0.0
    %212 = vmatprep.subr.mxu0 0.0
    %213 = vmatpush2.msra.mxu0 0.0
    %214 = vmatprep.subr.mxu0 0.0
    %215 = vmatpush2.msra.mxu0 0.0
    %216 = vmatprep.subr.mxu0 0.0
    %217 = vmatpush2.msra.mxu0 0.0
    %218 = vmatprep.subr.mxu0 0.0
    %219 = vmatpush2.msra.mxu0 0.0
    %220 = vmatprep.mubr.f32.mxu0 0.0
    %221 = vmatmul.mubr.f32.gmra.mxu0 %v154
    %v222 = vpop.f32.mrf.mxu0
    %v223 = vadd.f32 0.0, %v222
    %v224 = vpop.f32.mrf.mxu0
    %225 = vdwg.mxu0
    %227 = vrot.lane.b32.xlu0 %v223, 64
    %v228 = vpop.permute.xlu0 %227
    %vm230 = vcmask 523264
    %v231 = vsel %vm230, %v146, %v228
    %v232 = vld [vmem:[%s4] sm:$0x1]
    %v234 = vlaneseq
    %v235 = vshrl.u32 %v234, 7
    %v236 = vsub.s32 0, %v235
    %v237 = vrot.slane %v232, %v236
    %v239 = vadd.f32 %v231, %v237
    %240 = vst [vmem:[%s5] sm:$0xf] %v239
    // Predicated region
    $region38: #{two_tower_forward.1} parent=1 // pred_check
      _
    $region39: #{two_tower_forward.1} parent=1 // pred_check_branch
      %242 = sbr.rel (0) target = $region41
    $region40: #{two_tower_forward.1} parent=1 // pred_region
      _
    $region41: #{two_tower_forward.1} parent=1 // pred_fallthru
      _
    // Predicated region
    $region42: #{two_tower_forward.1} parent=1 // pred_check
      _
    $region43: #{two_tower_forward.1} parent=1 // pred_check_branch
      %244 = sbr.rel (0) target = $region45
    $region44: #{two_tower_forward.1} parent=1 // pred_region
      _
    $region45: #{two_tower_forward.1} parent=1 // pred_fallthru
      _
    %245 = vsyncpa [#allocation3], 1
    %246 = vsyncpa [#allocation5], 1
    %247 = vsyncpa [#allocation8], 1

</llo_original>
